<compile_context>
chip_gen: v7x
topology: tpu7x:2x2x1
jax: 0.10.0
libtpu: 0.0.40
codegen_flags: <defaults>
</compile_context>

<pallas_src>
import jax
import jax.numpy as jnp
from jax.experimental import pallas as pl
from jax.experimental.pallas import tpu as pltpu

EPS = 1e-5


def residual_kernel(p_ref, w1_ref, w2_ref, bn_ref, out_ref):
    # p_ref  : (9*C, P)   raw im2col patches of the zero-padded input, P = N*H*W on lanes.
    #                     row block k = dy*3+dx holds the C input channels of tap (dy, dx);
    #                     k == 4 (the center tap) is exactly the original input x.
    # w1_ref : (C, 9*C)   3x3 conv weights, laid out (C_out, kh*kw*C_in) to match patch rows.
    # w2_ref : (C, C)     1x1 conv weights, (C_out, C_in).
    # bn_ref : (4, C, 1)  BatchNorm affine params: [gamma1, beta1, gamma2, beta2].
    # out_ref: (C, P)
    C, P = out_ref.shape
    inv_p = 1.0 / P

    p = p_ref[...]                                     # (9C, P), loaded once
    a = jnp.maximum(p, 0.0)                            # ReLU (zero padding is ReLU-invariant)

    # --- 3x3 conv (stride 1, pad 1, no bias): single lane-dense im2col matmul on the MXU ---
    acc = jnp.dot(w1_ref[...], a, preferred_element_type=jnp.float32)        # (C, P)

    # --- BatchNorm2d #1: batch stats over P (lane-axis reductions), one-pass variance,
    #     affine folded into one per-channel scale/shift FMA ---
    mean1 = jnp.sum(acc, axis=1, keepdims=True) * inv_p                      # (C, 1)
    var1 = jnp.sum(acc * acc, axis=1, keepdims=True) * inv_p - mean1 * mean1
    s1 = bn_ref[0] * jax.lax.rsqrt(var1 + EPS)
    t1 = bn_ref[1] - mean1 * s1
    h = jnp.maximum(acc * s1 + t1, 0.0)                                      # BN + ReLU

    # --- 1x1 conv, no bias ---
    h2 = jnp.dot(w2_ref[...], h, preferred_element_type=jnp.float32)         # (C, P)

    # --- BatchNorm2d #2 ---
    mean2 = jnp.sum(h2, axis=1, keepdims=True) * inv_p
    var2 = jnp.sum(h2 * h2, axis=1, keepdims=True) * inv_p - mean2 * mean2
    s2 = bn_ref[2] * jax.lax.rsqrt(var2 + EPS)
    t2 = bn_ref[3] - mean2 * s2

    # --- residual add: center tap of the *raw* patches is exactly the original input x ---
    x_res = p[4 * C:5 * C, :]                                                # (C, P)
    out_ref[...] = x_res + (h2 * s2 + t2)                                    # lane-dense store


def residual_forward(x_nchw, w1_oihw, w2_oihw, g1, b1, g2, b2):
    """x_nchw: (N, C, H, W) float32, PyTorch layout. Returns (N, C, H, W)."""
    x = x_nchw.astype(jnp.float32)
    N, C, H, W = x.shape
    P = N * H * W

    # Wrapper-side layout plumbing (XLA): channels off the lane axis, spatial flattened to lanes.
    x_cnhw = jnp.transpose(x, (1, 0, 2, 3))                       # (C, N, H, W)
    xp = jnp.pad(x_cnhw, ((0, 0), (0, 0), (1, 1), (1, 1)))        # SAME padding for the 3x3 conv
    # im2col patches: (9*C, P). Single activation array handed to the kernel.
    patches = jnp.concatenate(
        [xp[:, :, dy:dy + H, dx:dx + W].reshape(C, P)
         for dy in range(3) for dx in range(3)],
        axis=0)

    # PyTorch conv weight (O, I, kh, kw) -> (O, kh*kw*I); column order matches patch row order.
    w1 = jnp.transpose(w1_oihw, (0, 2, 3, 1)).reshape(C, 9 * C).astype(jnp.float32)
    w2 = w2_oihw[:, :, 0, 0].astype(jnp.float32)                  # (C_out, C_in)
    bn = jnp.stack([g1, b1, g2, b2]).astype(jnp.float32).reshape(4, C, 1)

    out = pl.pallas_call(
        residual_kernel,
        out_shape=jax.ShapeDtypeStruct((C, P), jnp.float32),
        grid=(1,),
        in_specs=[
            pl.BlockSpec((9 * C, P), lambda i: (0, 0)),
            pl.BlockSpec((C, 9 * C), lambda i: (0, 0)),
            pl.BlockSpec((C, C), lambda i: (0, 0)),
            pl.BlockSpec((4, C, 1), lambda i: (0, 0, 0)),
        ],
        out_specs=pl.BlockSpec((C, P), lambda i: (0, 0)),
        compiler_params=pltpu.CompilerParams(dimension_semantics=("arbitrary",)),
    )(patches, w1, w2, bn)

    # (C, P) -> (N, C, H, W)
    return jnp.transpose(out.reshape(C, N, H, W), (1, 0, 2, 3))


def reference_forward(x_nchw, w1_oihw, w2_oihw, g1, b1, g2, b2):
    """Pure-JAX reference replicating the PyTorch module (training-mode BN)."""
    x = jnp.transpose(x_nchw, (0, 2, 3, 1)).astype(jnp.float32)
    w1_hwio = jnp.transpose(w1_oihw, (2, 3, 1, 0))
    w2_io = jnp.transpose(w2_oihw[:, :, 0, 0], (1, 0))

    a = jnp.maximum(x, 0.0)
    y = jax.lax.conv_general_dilated(a, w1_hwio, (1, 1), "SAME",
                                     dimension_numbers=("NHWC", "HWIO", "NHWC"))
    m, v = jnp.mean(y, axis=(0, 1, 2)), jnp.var(y, axis=(0, 1, 2))
    y = (y - m) / jnp.sqrt(v + EPS) * g1 + b1
    y = jnp.maximum(y, 0.0)
    y = jnp.einsum("nhwc,cd->nhwd", y, w2_io)
    m, v = jnp.mean(y, axis=(0, 1, 2)), jnp.var(y, axis=(0, 1, 2))
    y = (y - m) / jnp.sqrt(v + EPS) * g2 + b2
    return jnp.transpose(x + y, (0, 3, 1, 2))


if __name__ == "__main__":
    N, C, H, W = 2, 4, 16, 16
    key = jax.random.PRNGKey(0)
    kx, kw1, kw2, kg1, kb1, kg2, kb2 = jax.random.split(key, 7)

    x = jax.random.normal(kx, (N, C, H, W), jnp.float32)
    # Deterministic synthetic parameters (shapes from Residual.__init__ with channels=C)
    w1 = jax.random.normal(kw1, (C, C, 3, 3), jnp.float32) * 0.1   # Conv2d(C, C, 3) weight
    w2 = jax.random.normal(kw2, (C, C, 1, 1), jnp.float32) * 0.1   # Conv2d(C, C, 1) weight
    g1 = 1.0 + 0.1 * jax.random.normal(kg1, (C,), jnp.float32)     # BN1 gamma
    b1 = 0.1 * jax.random.normal(kb1, (C,), jnp.float32)           # BN1 beta
    g2 = 1.0 + 0.1 * jax.random.normal(kg2, (C,), jnp.float32)     # BN2 gamma
    b2 = 0.1 * jax.random.normal(kb2, (C,), jnp.float32)           # BN2 beta

    out = jax.block_until_ready(residual_forward(x, w1, w2, g1, b1, g2, b2))
    ref = jax.block_until_ready(reference_forward(x, w1, w2, g1, b1, g2, b2))

    assert out.shape == (N, C, H, W)
    max_err = float(jnp.max(jnp.abs(out - ref)))
    assert max_err < 1e-4, f"mismatch vs reference: {max_err}"
    print("KERNEL_OK")
</pallas_src>

<mosaic_0001>
module attributes {stable_mosaic.version = 11 : i64} {
  func.func @residual_kernel(%arg0: i32, %arg1: memref<36x512xf32, #tpu.memory_space<vmem>>, %arg2: memref<4x36xf32, #tpu.memory_space<vmem>>, %arg3: memref<4x4xf32, #tpu.memory_space<vmem>>, %arg4: memref<4x4x1xf32, #tpu.memory_space<vmem>>, %arg5: memref<4x512xf32, #tpu.memory_space<vmem>>) attributes {dimension_semantics = [#tpu.dimension_semantics<arbitrary>], iteration_bounds = array<i64: 1>, scalar_prefetch = 0 : i64, scratch_operands = 0 : i64, tpu.core_type = #tpu.core_type<tc>, window_params = [{pipeline_mode = #tpu.pipeline_mode<synchronous>, transform_indices = @transform_0, window_bounds = array<i64: 36, 512>}, {pipeline_mode = #tpu.pipeline_mode<synchronous>, transform_indices = @transform_1, window_bounds = array<i64: 4, 36>}, {pipeline_mode = #tpu.pipeline_mode<synchronous>, transform_indices = @transform_2, window_bounds = array<i64: 4, 4>}, {pipeline_mode = #tpu.pipeline_mode<synchronous>, transform_indices = @transform_3, window_bounds = array<i64: 4, 4, 1>}, {pipeline_mode = #tpu.pipeline_mode<synchronous>, transform_indices = @transform_4, window_bounds = array<i64: 4, 512>}]} {
    %c0 = arith.constant 0 : index
    %c0_0 = arith.constant 0 : index
    %0 = vector.load %arg1[%c0, %c0_0] : memref<36x512xf32, #tpu.memory_space<vmem>>, vector<36x512xf32>
    %cst = arith.constant 0.000000e+00 : f32
    %1 = vector.broadcast %cst : f32 to vector<36x512xf32>
    %2 = arith.maximumf %0, %1 : vector<36x512xf32>
    %c0_1 = arith.constant 0 : index
    %c0_2 = arith.constant 0 : index
    %3 = vector.load %arg2[%c0_1, %c0_2] : memref<4x36xf32, #tpu.memory_space<vmem>>, vector<4x36xf32>
    %cst_3 = arith.constant dense<0.000000e+00> : vector<4x512xf32>
    %4 = tpu.matmul %3, %2, %cst_3 {dimension_numbers = #tpu.dot_dimension_numbers<[1], [0], [0], [1], [0, 0, 1, 1], [], []>} : vector<4x36xf32>, vector<36x512xf32>, vector<4x512xf32> -> vector<4x512xf32>
    %cst_4 = arith.constant dense<0.000000e+00> : vector<4xf32>
    %5 = vector.multi_reduction <add>, %4, %cst_4 [1] : vector<4x512xf32> to vector<4xf32>
    %6 = vector.shape_cast %5 : vector<4xf32> to vector<4x1xf32>
    %cst_5 = arith.constant 0.001953125 : f32
    %7 = vector.broadcast %cst_5 : f32 to vector<4x1xf32>
    %8 = arith.mulf %6, %7 : vector<4x1xf32>
    %9 = arith.mulf %4, %4 : vector<4x512xf32>
    %cst_6 = arith.constant dense<0.000000e+00> : vector<4xf32>
    %10 = vector.multi_reduction <add>, %9, %cst_6 [1] : vector<4x512xf32> to vector<4xf32>
    %11 = vector.shape_cast %10 : vector<4xf32> to vector<4x1xf32>
    %cst_7 = arith.constant 0.001953125 : f32
    %12 = vector.broadcast %cst_7 : f32 to vector<4x1xf32>
    %13 = arith.mulf %11, %12 : vector<4x1xf32>
    %14 = arith.mulf %8, %8 : vector<4x1xf32>
    %15 = arith.subf %13, %14 : vector<4x1xf32>
    %c0_8 = arith.constant 0 : index
    %c0_9 = arith.constant 0 : index
    %c0_10 = arith.constant 0 : index
    %16 = vector.load %arg4[%c0_8, %c0_9, %c0_10] : memref<4x4x1xf32, #tpu.memory_space<vmem>>, vector<1x4x1xf32>
    %17 = vector.shape_cast %16 : vector<1x4x1xf32> to vector<4x1xf32>
    %cst_11 = arith.constant 9.99999974E-6 : f32
    %18 = vector.broadcast %cst_11 : f32 to vector<4x1xf32>
    %19 = arith.addf %15, %18 : vector<4x1xf32>
    %20 = math.rsqrt %19 : vector<4x1xf32>
    %21 = arith.mulf %17, %20 : vector<4x1xf32>
    %c1 = arith.constant 1 : index
    %c0_12 = arith.constant 0 : index
    %c0_13 = arith.constant 0 : index
    %22 = vector.load %arg4[%c1, %c0_12, %c0_13] : memref<4x4x1xf32, #tpu.memory_space<vmem>>, vector<1x4x1xf32>
    %23 = vector.shape_cast %22 : vector<1x4x1xf32> to vector<4x1xf32>
    %24 = arith.mulf %8, %21 : vector<4x1xf32>
    %25 = arith.subf %23, %24 : vector<4x1xf32>
    %26 = vector.broadcast %21 : vector<4x1xf32> to vector<4x512xf32>
    %27 = arith.mulf %4, %26 : vector<4x512xf32>
    %28 = vector.broadcast %25 : vector<4x1xf32> to vector<4x512xf32>
    %29 = arith.addf %27, %28 : vector<4x512xf32>
    %cst_14 = arith.constant 0.000000e+00 : f32
    %30 = vector.broadcast %cst_14 : f32 to vector<4x512xf32>
    %31 = arith.maximumf %29, %30 : vector<4x512xf32>
    %c0_15 = arith.constant 0 : index
    %c0_16 = arith.constant 0 : index
    %32 = vector.load %arg3[%c0_15, %c0_16] : memref<4x4xf32, #tpu.memory_space<vmem>>, vector<4x4xf32>
    %cst_17 = arith.constant dense<0.000000e+00> : vector<4x512xf32>
    %33 = tpu.matmul %32, %31, %cst_17 {dimension_numbers = #tpu.dot_dimension_numbers<[1], [0], [0], [1], [0, 0, 1, 1], [], []>} : vector<4x4xf32>, vector<4x512xf32>, vector<4x512xf32> -> vector<4x512xf32>
    %cst_18 = arith.constant dense<0.000000e+00> : vector<4xf32>
    %34 = vector.multi_reduction <add>, %33, %cst_18 [1] : vector<4x512xf32> to vector<4xf32>
    %35 = vector.shape_cast %34 : vector<4xf32> to vector<4x1xf32>
    %cst_19 = arith.constant 0.001953125 : f32
    %36 = vector.broadcast %cst_19 : f32 to vector<4x1xf32>
    %37 = arith.mulf %35, %36 : vector<4x1xf32>
    %38 = arith.mulf %33, %33 : vector<4x512xf32>
    %cst_20 = arith.constant dense<0.000000e+00> : vector<4xf32>
    %39 = vector.multi_reduction <add>, %38, %cst_20 [1] : vector<4x512xf32> to vector<4xf32>
    %40 = vector.shape_cast %39 : vector<4xf32> to vector<4x1xf32>
    %cst_21 = arith.constant 0.001953125 : f32
    %41 = vector.broadcast %cst_21 : f32 to vector<4x1xf32>
    %42 = arith.mulf %40, %41 : vector<4x1xf32>
    %43 = arith.mulf %37, %37 : vector<4x1xf32>
    %44 = arith.subf %42, %43 : vector<4x1xf32>
    %c2 = arith.constant 2 : index
    %c0_22 = arith.constant 0 : index
    %c0_23 = arith.constant 0 : index
    %45 = vector.load %arg4[%c2, %c0_22, %c0_23] : memref<4x4x1xf32, #tpu.memory_space<vmem>>, vector<1x4x1xf32>
    %46 = vector.shape_cast %45 : vector<1x4x1xf32> to vector<4x1xf32>
    %cst_24 = arith.constant 9.99999974E-6 : f32
    %47 = vector.broadcast %cst_24 : f32 to vector<4x1xf32>
    %48 = arith.addf %44, %47 : vector<4x1xf32>
    %49 = math.rsqrt %48 : vector<4x1xf32>
    %50 = arith.mulf %46, %49 : vector<4x1xf32>
    %c3 = arith.constant 3 : index
    %c0_25 = arith.constant 0 : index
    %c0_26 = arith.constant 0 : index
    %51 = vector.load %arg4[%c3, %c0_25, %c0_26] : memref<4x4x1xf32, #tpu.memory_space<vmem>>, vector<1x4x1xf32>
    %52 = vector.shape_cast %51 : vector<1x4x1xf32> to vector<4x1xf32>
    %53 = arith.mulf %37, %50 : vector<4x1xf32>
    %54 = arith.subf %52, %53 : vector<4x1xf32>
    %55 = vector.extract_strided_slice %0 {offsets = [16, 0], sizes = [4, 512], strides = [1, 1]} : vector<36x512xf32> to vector<4x512xf32>
    %56 = vector.broadcast %50 : vector<4x1xf32> to vector<4x512xf32>
    %57 = arith.mulf %33, %56 : vector<4x512xf32>
    %58 = vector.broadcast %54 : vector<4x1xf32> to vector<4x512xf32>
    %59 = arith.addf %57, %58 : vector<4x512xf32>
    %60 = arith.addf %55, %59 : vector<4x512xf32>
    %c0_27 = arith.constant 0 : index
    %c0_28 = arith.constant 0 : index
    %61 = vector.load %arg5[%c0_27, %c0_28] : memref<4x512xf32, #tpu.memory_space<vmem>>, vector<4x512xf32>
    tpu.vector_store %arg5[%c0_27, %c0_28], %60 {strides = array<i32>} : memref<4x512xf32, #tpu.memory_space<vmem>>, vector<4x512xf32>,
    return
  }
  func.func @transform_0(%arg0: i32) -> (i32, i32) {
    %c0_i32 = arith.constant 0 : i32
    %c0_i32_0 = arith.constant 0 : i32
    %c0_i32_1 = arith.constant 0 : i32
    return %c0_i32, %c0_i32_0 : i32, i32
  }
  func.func @transform_1(%arg0: i32) -> (i32, i32) {
    %c0_i32 = arith.constant 0 : i32
    %c0_i32_0 = arith.constant 0 : i32
    %c0_i32_1 = arith.constant 0 : i32
    return %c0_i32, %c0_i32_0 : i32, i32
  }
  func.func @transform_2(%arg0: i32) -> (i32, i32) {
    %c0_i32 = arith.constant 0 : i32
    %c0_i32_0 = arith.constant 0 : i32
    %c0_i32_1 = arith.constant 0 : i32
    return %c0_i32, %c0_i32_0 : i32, i32
  }
  func.func @transform_3(%arg0: i32) -> (i32, i32, i32) {
    %c0_i32 = arith.constant 0 : i32
    %c0_i32_0 = arith.constant 0 : i32
    %c0_i32_1 = arith.constant 0 : i32
    %c0_i32_2 = arith.constant 0 : i32
    return %c0_i32, %c0_i32_0, %c0_i32_1 : i32, i32, i32
  }
  func.func @transform_4(%arg0: i32) -> (i32, i32) {
    %c0_i32 = arith.constant 0 : i32
    %c0_i32_0 = arith.constant 0 : i32
    %c0_i32_1 = arith.constant 0 : i32
    return %c0_i32, %c0_i32_0 : i32, i32
  }
}

</mosaic_0001>

<llo_original>
// kernel: tpu_custom_call.1
$region0: #{tpu_custom_call.1}
  #allocation0 [shape = 'u32[]', space=smem, size = 0x4, offset = 0x4, fixed_abs, tag = 'smem constant byte address 0x4 - core index']
  #allocation1 [shape = 'u32[144,128]{1,0:T(1,128)}', space=vmem, size = 0x12000, scoped, tag = 'internal scratch']
  %s0 = inlined_call_operand.hbm [shape: f32[36,512], index: 0, kind: input, shape index: {}]
  %s1 = inlined_call_operand.vmem [shape: f32[4,36], index: 1, kind: input, shape index: {}]
  %s2 = inlined_call_operand.vmem [shape: f32[4,4], index: 2, kind: input, shape index: {}]
  %s3 = inlined_call_operand.vmem [shape: f32[4,4,1], index: 3, kind: input, shape index: {}]
  %s4 = inlined_call_operand.hbm [shape: f32[4,512], index: 4, kind: output, shape index: {}]
  %s5 = sld [smem:[#allocation0]]
  $region30: #{tpu_custom_call.1} parent=0
    _
  %s7 = ssub.s32 1, %s5
  %s8 = scalar_select 0, %s7, %s5
  $region1: #{tpu_custom_call.1} parent=0
    #allocation2 [shape = 'u8[81920]{0}', space=vmem, size = 0x14000, scoped, tag = 'input window, operand 0, single buffered']
    #allocation3 [shape = 's32[1]{0}', space=sflag, size = 0x4, scoped, tag = 'scoped memory for tpu_custom_call.1']
    #allocation4 [shape = 's32[1]{0}', space=sflag, size = 0x4, scoped, tag = 'scoped memory for tpu_custom_call.1']
    #allocation5 [shape = 'u8[8192]{0}', space=vmem, size = 0x2000, scoped, tag = 'output window, operand 0, single buffered']
    %9 = vsyncpa [#allocation3], 0
    %10 = vsyncpa [#allocation4], 0
    // Predicated region
    $region2: #{tpu_custom_call.1} parent=1 // pred_check
      _
    $region3: #{tpu_custom_call.1} parent=1 // pred_check_branch
      %12 = sbr.rel (0) target = $region5
    $region4: #{tpu_custom_call.1} parent=1 // pred_region
      %s14 = ssub.s32 2560, 2560
      %15 = vsyncadd [#allocation3], %s14
      %s16 = sshll.u32 [#allocation2], 4
      %s17 = int_to_ptr.vmem [resolvable:$true] %s16
      %22 = dma.hbm_to_vmem [thread:$0]  %s0, 2560, %s17, [#allocation3], 512, 512, 32
    $region5: #{tpu_custom_call.1} parent=1 // pred_fallthru
      _
    // Predicated region
    $region6: #{tpu_custom_call.1} parent=1 // pred_check
      _
    $region7: #{tpu_custom_call.1} parent=1 // pred_check_branch
      %24 = sbr.rel (0) target = $region9
    $region8: #{tpu_custom_call.1} parent=1 // pred_region
      _
    $region9: #{tpu_custom_call.1} parent=1 // pred_fallthru
      _
    // Predicated region
    $region10: #{tpu_custom_call.1} parent=1 // pred_check
      _
    $region11: #{tpu_custom_call.1} parent=1 // pred_check_branch
      %26 = sbr.rel (0) target = $region13
    $region12: #{tpu_custom_call.1} parent=1 // pred_region
      _
    $region13: #{tpu_custom_call.1} parent=1 // pred_fallthru
      _
    // Predicated region
    $region14: #{tpu_custom_call.1} parent=1 // pred_check
      _
    $region15: #{tpu_custom_call.1} parent=1 // pred_check_branch
      %28 = sbr.rel (0) target = $region17
    $region16: #{tpu_custom_call.1} parent=1 // pred_region
      _
    $region17: #{tpu_custom_call.1} parent=1 // pred_fallthru
      _
    // Predicated region
    $region18: #{tpu_custom_call.1} parent=1 // pred_check
      _
    $region19: #{tpu_custom_call.1} parent=1 // pred_check_branch
      %30 = sbr.rel (0) target = $region21
    $region20: #{tpu_custom_call.1} parent=1 // pred_region
      %31 = dma.done [#allocation3], 2560
    $region21: #{tpu_custom_call.1} parent=1 // pred_fallthru
      _
    %v32 = vld [vmem:[#allocation2] sm:$0xff]
    %v33 = vld [vmem:[#allocation2 + $0x8] sm:$0xff]
    %v34 = vld [vmem:[#allocation2 + $0x10] sm:$0xff]
    %v35 = vld [vmem:[#allocation2 + $0x18] sm:$0xff]
    %v36 = vld [vmem:[#allocation2 + $0x20] sm:$0xff]
    %v37 = vld [vmem:[#allocation2 + $0x28] sm:$0xff]
    %v38 = vld [vmem:[#allocation2 + $0x30] sm:$0xff]
    %v39 = vld [vmem:[#allocation2 + $0x38] sm:$0xff]
    %v40 = vld [vmem:[#allocation2 + $0x40] sm:$0xff]
    %v41 = vld [vmem:[#allocation2 + $0x48] sm:$0xff]
    %v42 = vld [vmem:[#allocation2 + $0x50] sm:$0xff]
    %v43 = vld [vmem:[#allocation2 + $0x58] sm:$0xff]
    %v44 = vld [vmem:[#allocation2 + $0x60] sm:$0xff]
    %v45 = vld [vmem:[#allocation2 + $0x68] sm:$0xff]
    %v46 = vld [vmem:[#allocation2 + $0x70] sm:$0xff]
    %v47 = vld [vmem:[#allocation2 + $0x78] sm:$0xff]
    %v48 = vld [vmem:[#allocation2 + $0x80] sm:$0xf]
    %v49 = vld [vmem:[#allocation2 + $0x88] sm:$0xf]
    %v50 = vld [vmem:[#allocation2 + $0x90] sm:$0xf]
    %v51 = vld [vmem:[#allocation2 + $0x98] sm:$0xf]
    %v52 = vmax.f32 %v32, 0.0
    %v53 = vmax.f32 %v33, 0.0
    %v54 = vmax.f32 %v34, 0.0
    %v55 = vmax.f32 %v35, 0.0
    %v56 = vmax.f32 %v36, 0.0
    %v57 = vmax.f32 %v37, 0.0
    %v58 = vmax.f32 %v38, 0.0
    %v59 = vmax.f32 %v39, 0.0
    %v60 = vmax.f32 %v40, 0.0
    %v61 = vmax.f32 %v41, 0.0
    %v62 = vmax.f32 %v42, 0.0
    %v63 = vmax.f32 %v43, 0.0
    %v64 = vmax.f32 %v44, 0.0
    %v65 = vmax.f32 %v45, 0.0
    %v66 = vmax.f32 %v46, 0.0
    %v67 = vmax.f32 %v47, 0.0
    %v68 = vmax.f32 %v48, 0.0
    %v69 = vmax.f32 %v49, 0.0
    %v70 = vmax.f32 %v50, 0.0
    %v71 = vmax.f32 %v51, 0.0
    %v72 = vld [vmem:[%s1] sm:$0xf]
    %vm73 = vcmask 293888
    %v75 = vsel %vm73, %v72, 0
    %vm77 = vcmask 1043456
    %v79 = vsel %vm77, %v68, 0
    %v82 = vsel %vm77, %v69, 0
    %v85 = vsel %vm77, %v70, 0
    %v88 = vsel %vm77, %v71, 0
    %90 = vmatprep.subr.mxu0 %v53
    %91 = vmatpush1.msra.mxu0 %v52
    %92 = vmatprep.subr.mxu0 %v57
    %93 = vmatpush1.msra.mxu0 %v56
    %94 = vmatprep.subr.mxu0 %v61
    %95 = vmatpush1.msra.mxu0 %v60
    %96 = vmatprep.subr.mxu0 %v65
    %97 = vmatpush1.msra.mxu0 %v64
    %98 = vmatprep.subr.mxu0 %v82
    %99 = vmatpush1.msra.mxu0 %v79
    %100 = vmatprep.subr.mxu0 0.0
    %101 = vmatpush1.msra.mxu0 0.0
    %102 = vmatprep.subr.mxu0 0.0
    %103 = vmatpush1.msra.mxu0 0.0
    %104 = vmatprep.subr.mxu0 0.0
    %105 = vmatpush1.msra.mxu0 0.0
    %106 = vmatprep.subr.mxu0 0.0
    %107 = vmatpush1.msra.mxu0 0.0
    %108 = vmatprep.subr.mxu0 0.0
    %109 = vmatpush1.msra.mxu0 0.0
    %110 = vmatprep.subr.mxu0 0.0
    %111 = vmatpush1.msra.mxu0 0.0
    %112 = vmatprep.subr.mxu0 0.0
    %113 = vmatpush1.msra.mxu0 0.0
    %114 = vmatprep.subr.mxu0 0.0
    %115 = vmatpush1.msra.mxu0 0.0
    %116 = vmatprep.subr.mxu0 0.0
    %117 = vmatpush1.msra.mxu0 0.0
    %118 = vmatprep.subr.mxu0 0.0
    %119 = vmatpush1.msra.mxu0 0.0
    %120 = vmatprep.subr.mxu0 0.0
    %121 = vmatpush1.msra.mxu0 0.0
    %122 = vmatprep.subr.mxu0 0.0
    %123 = vmatpush1.msra.mxu0 0.0
    %124 = vmatprep.subr.mxu0 0.0
    %125 = vmatpush1.msra.mxu0 0.0
    %126 = vmatprep.subr.mxu0 0.0
    %127 = vmatpush1.msra.mxu0 0.0
    %128 = vmatprep.subr.mxu0 0.0
    %129 = vmatpush1.msra.mxu0 0.0
    %130 = vmatprep.subr.mxu0 0.0
    %131 = vmatpush1.msra.mxu0 0.0
    %132 = vmatprep.subr.mxu0 0.0
    %133 = vmatpush1.msra.mxu0 0.0
    %134 = vmatprep.subr.mxu0 0.0
    %135 = vmatpush1.msra.mxu0 0.0
    %136 = vmatprep.subr.mxu0 0.0
    %137 = vmatpush1.msra.mxu0 0.0
    %138 = vmatprep.subr.mxu0 0.0
    %139 = vmatpush1.msra.mxu0 0.0
    %140 = vmatprep.subr.mxu0 0.0
    %141 = vmatpush1.msra.mxu0 0.0
    %142 = vmatprep.subr.mxu0 0.0
    %143 = vmatpush1.msra.mxu0 0.0
    %144 = vmatprep.subr.mxu0 0.0
    %145 = vmatpush1.msra.mxu0 0.0
    %146 = vmatprep.subr.mxu0 0.0
    %147 = vmatpush1.msra.mxu0 0.0
    %148 = vmatprep.subr.mxu0 0.0
    %149 = vmatpush1.msra.mxu0 0.0
    %150 = vmatprep.subr.mxu0 0.0
    %151 = vmatpush1.msra.mxu0 0.0
    %152 = vmatprep.subr.mxu0 0.0
    %153 = vmatpush1.msra.mxu0 0.0
    %154 = vmatprep.mubr.f32.mxu0 0.0
    %155 = vmatmul.mubr.f32.gmra.mrb[0].mxu0 %v75
    %v156 = vpop.f32.mrb[0].mxu0
    %v157 = vadd.f32 0.0, %v156
    %v158 = vpop.f32.mrb[0].mxu0
    %v159 = vadd.f32 0.0, %v158
    %160 = vdwg.mxu0
    %161 = vmatprep.subr.mxu0 %v55
    %162 = vmatpush1.msra.mxu0 %v54
    %163 = vmatprep.subr.mxu0 %v59
    %164 = vmatpush1.msra.mxu0 %v58
    %165 = vmatprep.subr.mxu0 %v63
    %166 = vmatpush1.msra.mxu0 %v62
    %167 = vmatprep.subr.mxu0 %v67
    %168 = vmatpush1.msra.mxu0 %v66
    %169 = vmatprep.subr.mxu0 %v88
    %170 = vmatpush1.msra.mxu0 %v85
    %171 = vmatprep.subr.mxu0 0.0
    %172 = vmatpush1.msra.mxu0 0.0
    %173 = vmatprep.subr.mxu0 0.0
    %174 = vmatpush1.msra.mxu0 0.0
    %175 = vmatprep.subr.mxu0 0.0
    %176 = vmatpush1.msra.mxu0 0.0
    %177 = vmatprep.subr.mxu0 0.0
    %178 = vmatpush1.msra.mxu0 0.0
    %179 = vmatprep.subr.mxu0 0.0
    %180 = vmatpush1.msra.mxu0 0.0
    %181 = vmatprep.subr.mxu0 0.0
    %182 = vmatpush1.msra.mxu0 0.0
    %183 = vmatprep.subr.mxu0 0.0
    %184 = vmatpush1.msra.mxu0 0.0
    %185 = vmatprep.subr.mxu0 0.0
    %186 = vmatpush1.msra.mxu0 0.0
    %187 = vmatprep.subr.mxu0 0.0
    %188 = vmatpush1.msra.mxu0 0.0
    %189 = vmatprep.subr.mxu0 0.0
    %190 = vmatpush1.msra.mxu0 0.0
    %191 = vmatprep.subr.mxu0 0.0
    %192 = vmatpush1.msra.mxu0 0.0
    %193 = vmatprep.subr.mxu0 0.0
    %194 = vmatpush1.msra.mxu0 0.0
    %195 = vmatprep.subr.mxu0 0.0
    %196 = vmatpush1.msra.mxu0 0.0
    %197 = vmatprep.subr.mxu0 0.0
    %198 = vmatpush1.msra.mxu0 0.0
    %199 = vmatprep.subr.mxu0 0.0
    %200 = vmatpush1.msra.mxu0 0.0
    %201 = vmatprep.subr.mxu0 0.0
    %202 = vmatpush1.msra.mxu0 0.0
    %203 = vmatprep.subr.mxu0 0.0
    %204 = vmatpush1.msra.mxu0 0.0
    %205 = vmatprep.subr.mxu0 0.0
    %206 = vmatpush1.msra.mxu0 0.0
    %207 = vmatprep.subr.mxu0 0.0
    %208 = vmatpush1.msra.mxu0 0.0
    %209 = vmatprep.subr.mxu0 0.0
    %210 = vmatpush1.msra.mxu0 0.0
    %211 = vmatprep.subr.mxu0 0.0
    %212 = vmatpush1.msra.mxu0 0.0
    %213 = vmatprep.subr.mxu0 0.0
    %214 = vmatpush1.msra.mxu0 0.0
    %215 = vmatprep.subr.mxu0 0.0
    %216 = vmatpush1.msra.mxu0 0.0
    %217 = vmatprep.subr.mxu0 0.0
    %218 = vmatpush1.msra.mxu0 0.0
    %219 = vmatprep.subr.mxu0 0.0
    %220 = vmatpush1.msra.mxu0 0.0
    %221 = vmatprep.subr.mxu0 0.0
    %222 = vmatpush1.msra.mxu0 0.0
    %223 = vmatprep.subr.mxu0 0.0
    %224 = vmatpush1.msra.mxu0 0.0
    %225 = vmatprep.mubr.f32.mxu0 0.0
    %226 = vmatmul.mubr.f32.gmra.mrb[0].mxu0 %v75
    %v227 = vpop.f32.mrb[0].mxu0
    %v228 = vadd.f32 0.0, %v227
    %v229 = vpop.f32.mrb[0].mxu0
    %v230 = vadd.f32 0.0, %v229
    %231 = vdwg.mxu0
    %v232 = vsel %vm77, %v157, 0.0
    %v233 = vsel %vm77, %v159, 0.0
    %v234 = vadd.f32 %v232, %v233
    %v235 = vsel %vm77, %v228, 0.0
    %v236 = vadd.f32 %v234, %v235
    %v237 = vsel %vm77, %v230, 0.0
    %v238 = vadd.f32 %v236, %v237
    %239 = vadd.xlane.f32.xlu0 %v238
    %v240 = vpop.xlane.xlu0 %239
    %v241 = vmul.f32 %v240, 0.001953125
    %v242 = vmul.f32 %v157, %v157
    %v243 = vmul.f32 %v159, %v159
    %v244 = vmul.f32 %v228, %v228
    %v245 = vmul.f32 %v230, %v230
    %v246 = vsel %vm77, %v242, 0.0
    %v247 = vsel %vm77, %v243, 0.0
    %v248 = vadd.f32 %v246, %v247
    %v249 = vsel %vm77, %v244, 0.0
    %v250 = vadd.f32 %v248, %v249
    %v251 = vsel %vm77, %v245, 0.0
    %v252 = vadd.f32 %v250, %v251
    %253 = vadd.xlane.f32.xlu0 %v252
    %v254 = vpop.xlane.xlu0 %253
    %v255 = vmul.f32 %v254, 0.001953125
    %v256 = vmul.f32 %v241, %v241
    %v257 = vsub.f32 %v255, %v256
    %v258 = vld [vmem:[%s3] sm:$0xf]
    %v259 = vadd.f32 %v257, 1e-05
    %v260 = vrsqrt.pop %v259
    %v261 = vmul.f32 %v258, %v260
    %s262 = scalar_lea.vmem %s3, 4
    %v263 = vld [vmem:[%s262] sm:$0xf]
    %v264 = vmul.f32 %v241, %v261
    %v265 = vsub.f32 %v263, %v264
    %267 = vset.pattern.permute.xlu0 0
    %268 = vperm.xlu0 %267, %v261
    %v269 = vpop.permute.xlu0 %268
    %v271 = vmul.f32 %v157, %v269
    %v272 = vmul.f32 %v159, %v269
    %v273 = vmul.f32 %v228, %v269
    %v274 = vmul.f32 %v230, %v269
    %276 = vset.pattern.permute.xlu0 0
    %277 = vperm.xlu0 %276, %v265
    %v278 = vpop.permute.xlu0 %277
    %v280 = vadd.f32 %v271, %v278
    %v281 = vadd.f32 %v272, %v278
    %v282 = vadd.f32 %v273, %v278
    %v283 = vadd.f32 %v274, %v278
    %v284 = vmax.f32 %v280, 0.0
    %v285 = vmax.f32 %v281, 0.0
    %v286 = vmax.f32 %v282, 0.0
    %v287 = vmax.f32 %v283, 0.0
    %v288 = vld [vmem:[%s2] sm:$0xf]
    %vm289 = vcmask 31744
    %v291 = vsel %vm289, %v288, 0
    %v294 = vsel %vm77, %v284, 0
    %v297 = vsel %vm77, %v285, 0
    %v300 = vsel %vm77, %v286, 0
    %v303 = vsel %vm77, %v287, 0
    %305 = vmatprep.subr.mxu0 %v297
    %306 = vmatpush1.msra.mxu0 %v294
    %307 = vmatprep.subr.mxu0 0.0
    %308 = vmatpush1.msra.mxu0 0.0
    %309 = vmatprep.subr.mxu0 0.0
    %310 = vmatpush1.msra.mxu0 0.0
    %311 = vmatprep.subr.mxu0 0.0
    %312 = vmatpush1.msra.mxu0 0.0
    %313 = vmatprep.subr.mxu0 0.0
    %314 = vmatpush1.msra.mxu0 0.0
    %315 = vmatprep.subr.mxu0 0.0
    %316 = vmatpush1.msra.mxu0 0.0
    %317 = vmatprep.subr.mxu0 0.0
    %318 = vmatpush1.msra.mxu0 0.0
    %319 = vmatprep.subr.mxu0 0.0
    %320 = vmatpush1.msra.mxu0 0.0
    %321 = vmatprep.subr.mxu0 0.0
    %322 = vmatpush1.msra.mxu0 0.0
    %323 = vmatprep.subr.mxu0 0.0
    %324 = vmatpush1.msra.mxu0 0.0
    %325 = vmatprep.subr.mxu0 0.0
    %326 = vmatpush1.msra.mxu0 0.0
    %327 = vmatprep.subr.mxu0 0.0
    %328 = vmatpush1.msra.mxu0 0.0
    %329 = vmatprep.subr.mxu0 0.0
    %330 = vmatpush1.msra.mxu0 0.0
    %331 = vmatprep.subr.mxu0 0.0
    %332 = vmatpush1.msra.mxu0 0.0
    %333 = vmatprep.subr.mxu0 0.0
    %334 = vmatpush1.msra.mxu0 0.0
    %335 = vmatprep.subr.mxu0 0.0
    %336 = vmatpush1.msra.mxu0 0.0
    %337 = vmatprep.subr.mxu0 0.0
    %338 = vmatpush1.msra.mxu0 0.0
    %339 = vmatprep.subr.mxu0 0.0
    %340 = vmatpush1.msra.mxu0 0.0
    %341 = vmatprep.subr.mxu0 0.0
    %342 = vmatpush1.msra.mxu0 0.0
    %343 = vmatprep.subr.mxu0 0.0
    %344 = vmatpush1.msra.mxu0 0.0
    %345 = vmatprep.subr.mxu0 0.0
    %346 = vmatpush1.msra.mxu0 0.0
    %347 = vmatprep.subr.mxu0 0.0
    %348 = vmatpush1.msra.mxu0 0.0
    %349 = vmatprep.subr.mxu0 0.0
    %350 = vmatpush1.msra.mxu0 0.0
    %351 = vmatprep.subr.mxu0 0.0
    %352 = vmatpush1.msra.mxu0 0.0
    %353 = vmatprep.subr.mxu0 0.0
    %354 = vmatpush1.msra.mxu0 0.0
    %355 = vmatprep.subr.mxu0 0.0
    %356 = vmatpush1.msra.mxu0 0.0
    %357 = vmatprep.subr.mxu0 0.0
    %358 = vmatpush1.msra.mxu0 0.0
    %359 = vmatprep.subr.mxu0 0.0
    %360 = vmatpush1.msra.mxu0 0.0
    %361 = vmatprep.subr.mxu0 0.0
    %362 = vmatpush1.msra.mxu0 0.0
    %363 = vmatprep.subr.mxu0 0.0
    %364 = vmatpush1.msra.mxu0 0.0
    %365 = vmatprep.subr.mxu0 0.0
    %366 = vmatpush1.msra.mxu0 0.0
    %367 = vmatprep.subr.mxu0 0.0
    %368 = vmatpush1.msra.mxu0 0.0
    %369 = vmatprep.mubr.f32.mxu0 0.0
    %370 = vmatmul.mubr.f32.gmra.mrb[0].mxu0 %v291
    %v371 = vpop.f32.mrb[0].mxu0
    %v372 = vadd.f32 0.0, %v371
    %v373 = vpop.f32.mrb[0].mxu0
    %v374 = vadd.f32 0.0, %v373
    %375 = vdwg.mxu0
    %376 = vmatprep.subr.mxu0 %v303
    %377 = vmatpush1.msra.mxu0 %v300
    %378 = vmatprep.subr.mxu0 0.0
    %379 = vmatpush1.msra.mxu0 0.0
    %380 = vmatprep.subr.mxu0 0.0
    %381 = vmatpush1.msra.mxu0 0.0
    %382 = vmatprep.subr.mxu0 0.0
    %383 = vmatpush1.msra.mxu0 0.0
    %384 = vmatprep.subr.mxu0 0.0
    %385 = vmatpush1.msra.mxu0 0.0
    %386 = vmatprep.subr.mxu0 0.0
    %387 = vmatpush1.msra.mxu0 0.0
    %388 = vmatprep.subr.mxu0 0.0
    %389 = vmatpush1.msra.mxu0 0.0
    %390 = vmatprep.subr.mxu0 0.0
    %391 = vmatpush1.msra.mxu0 0.0
    %392 = vmatprep.subr.mxu0 0.0
    %393 = vmatpush1.msra.mxu0 0.0
    %394 = vmatprep.subr.mxu0 0.0
    %395 = vmatpush1.msra.mxu0 0.0
    %396 = vmatprep.subr.mxu0 0.0
    %397 = vmatpush1.msra.mxu0 0.0
    %398 = vmatprep.subr.mxu0 0.0
    %399 = vmatpush1.msra.mxu0 0.0
    %400 = vmatprep.subr.mxu0 0.0
    %401 = vmatpush1.msra.mxu0 0.0
    %402 = vmatprep.subr.mxu0 0.0
    %403 = vmatpush1.msra.mxu0 0.0
    %404 = vmatprep.subr.mxu0 0.0
    %405 = vmatpush1.msra.mxu0 0.0
    %406 = vmatprep.subr.mxu0 0.0
    %407 = vmatpush1.msra.mxu0 0.0
    %408 = vmatprep.subr.mxu0 0.0
    %409 = vmatpush1.msra.mxu0 0.0
    %410 = vmatprep.subr.mxu0 0.0
    %411 = vmatpush1.msra.mxu0 0.0
    %412 = vmatprep.subr.mxu0 0.0
    %413 = vmatpush1.msra.mxu0 0.0
    %414 = vmatprep.subr.mxu0 0.0
    %415 = vmatpush1.msra.mxu0 0.0
    %416 = vmatprep.subr.mxu0 0.0
    %417 = vmatpush1.msra.mxu0 0.0
    %418 = vmatprep.subr.mxu0 0.0
    %419 = vmatpush1.msra.mxu0 0.0
    %420 = vmatprep.subr.mxu0 0.0
    %421 = vmatpush1.msra.mxu0 0.0
    %422 = vmatprep.subr.mxu0 0.0
    %423 = vmatpush1.msra.mxu0 0.0
    %424 = vmatprep.subr.mxu0 0.0
    %425 = vmatpush1.msra.mxu0 0.0
    %426 = vmatprep.subr.mxu0 0.0
    %427 = vmatpush1.msra.mxu0 0.0
    %428 = vmatprep.subr.mxu0 0.0
    %429 = vmatpush1.msra.mxu0 0.0
    %430 = vmatprep.subr.mxu0 0.0
    %431 = vmatpush1.msra.mxu0 0.0
    %432 = vmatprep.subr.mxu0 0.0
    %433 = vmatpush1.msra.mxu0 0.0
    %434 = vmatprep.subr.mxu0 0.0
    %435 = vmatpush1.msra.mxu0 0.0
    %436 = vmatprep.subr.mxu0 0.0
    %437 = vmatpush1.msra.mxu0 0.0
    %438 = vmatprep.subr.mxu0 0.0
    %439 = vmatpush1.msra.mxu0 0.0
    %440 = vmatprep.mubr.f32.mxu0 0.0
    %441 = vmatmul.mubr.f32.gmra.mrb[0].mxu0 %v291
    %v442 = vpop.f32.mrb[0].mxu0
    %v443 = vadd.f32 0.0, %v442
    %v444 = vpop.f32.mrb[0].mxu0
    %v445 = vadd.f32 0.0, %v444
    %446 = vdwg.mxu0
    %v447 = vsel %vm77, %v372, 0.0
    %v448 = vsel %vm77, %v374, 0.0
    %v449 = vadd.f32 %v447, %v448
    %v450 = vsel %vm77, %v443, 0.0
    %v451 = vadd.f32 %v449, %v450
    %v452 = vsel %vm77, %v445, 0.0
    %v453 = vadd.f32 %v451, %v452
    %454 = vadd.xlane.f32.xlu0 %v453
    %v455 = vpop.xlane.xlu0 %454
    %v456 = vmul.f32 %v455, 0.001953125
    %v457 = vmul.f32 %v372, %v372
    %v458 = vmul.f32 %v374, %v374
    %v459 = vmul.f32 %v443, %v443
    %v460 = vmul.f32 %v445, %v445
    %v461 = vsel %vm77, %v457, 0.0
    %v462 = vsel %vm77, %v458, 0.0
    %v463 = vadd.f32 %v461, %v462
    %v464 = vsel %vm77, %v459, 0.0
    %v465 = vadd.f32 %v463, %v464
    %v466 = vsel %vm77, %v460, 0.0
    %v467 = vadd.f32 %v465, %v466
    %468 = vadd.xlane.f32.xlu0 %v467
    %v469 = vpop.xlane.xlu0 %468
    %v470 = vmul.f32 %v469, 0.001953125
    %v471 = vmul.f32 %v456, %v456
    %v472 = vsub.f32 %v470, %v471
    %s473 = scalar_lea.vmem %s3, 8
    %v474 = vld [vmem:[%s473] sm:$0xf]
    %v475 = vadd.f32 %v472, 1e-05
    %v476 = vrsqrt.pop %v475
    %v477 = vmul.f32 %v474, %v476
    %s478 = scalar_lea.vmem %s3, 12
    %v479 = vld [vmem:[%s478] sm:$0xf]
    %v480 = vmul.f32 %v456, %v477
    %v481 = vsub.f32 %v479, %v480
    %483 = vset.pattern.permute.xlu0 0
    %484 = vperm.xlu0 %483, %v477
    %v485 = vpop.permute.xlu0 %484
    %v487 = vmul.f32 %v372, %v485
    %v488 = vmul.f32 %v374, %v485
    %v489 = vmul.f32 %v443, %v485
    %v490 = vmul.f32 %v445, %v485
    %492 = vset.pattern.permute.xlu0 0
    %493 = vperm.xlu0 %492, %v481
    %v494 = vpop.permute.xlu0 %493
    %v496 = vadd.f32 %v487, %v494
    %v497 = vadd.f32 %v488, %v494
    %v498 = vadd.f32 %v489, %v494
    %v499 = vadd.f32 %v490, %v494
    %v500 = vadd.f32 %v40, %v496
    %v501 = vadd.f32 %v41, %v497
    %v502 = vadd.f32 %v42, %v498
    %v503 = vadd.f32 %v43, %v499
    %v508 = vcombine.low %v500, %v501
    %v509 = vcombine.low %v502, %v503
    %512 = vst [vmem:[#allocation5] sm:$0xff] %v508
    %513 = vst [vmem:[#allocation5 + $0x8] sm:$0xff] %v509
    // Predicated region
    $region22: #{tpu_custom_call.1} parent=1 // pred_check
      _
    $region23: #{tpu_custom_call.1} parent=1 // pred_check_branch
      %515 = sbr.rel (0) target = $region25
    $region24: #{tpu_custom_call.1} parent=1 // pred_region
      %s517 = ssub.s32 256, 256
      %518 = vsyncadd [#allocation4], %s517
      %s520 = sshll.u32 [#allocation5], 4
      %s521 = int_to_ptr.vmem [resolvable:$true] %s520
      %523 = dma.vmem_to_hbm [thread:$0]  %s521, 256, %s4, [#allocation4]
    $region25: #{tpu_custom_call.1} parent=1 // pred_fallthru
      _
    // Predicated region
    $region26: #{tpu_custom_call.1} parent=1 // pred_check
      _
    $region27: #{tpu_custom_call.1} parent=1 // pred_check_branch
      %525 = sbr.rel (0) target = $region29
    $region28: #{tpu_custom_call.1} parent=1 // pred_region
      %526 = dma.done [#allocation4], 256
    $region29: #{tpu_custom_call.1} parent=1 // pred_fallthru
      _
    %527 = vsyncpa [#allocation3], 1
    %528 = vsyncpa [#allocation4], 1

</llo_original>
